<compile_context>
chip_gen: v7x
topology: tpu7x:2x2x1
jax: 0.10.0
libtpu: 0.0.40
codegen_flags: <defaults>
</compile_context>

<pallas_src>
import functools

import jax
import jax.numpy as jnp
import numpy as np
from jax.experimental import pallas as pl
from jax.experimental.pallas import tpu as pltpu

LANES = 128
MAX_TILE_ROWS = 4096      # slab rows per grid step (1-2 MiB per stream per buffer)
NSPLIT = 2                # leading "parallel" grid axis: megacore row split (v7x)


def _round_up(x, m):
    return ((x + m - 1) // m) * m


def _shift_lanes_left(x, d):
    """y[:, j] = x[:, j + d]  (the d wrapped lanes at the row end are never read)."""
    if d == 0:
        return x
    return jnp.concatenate([x[:, d:], x[:, :d]], axis=1)


# ---------------------------------------------------------------------------
# Kernel: streaming sufficient statistics [sum w*p*l, sum w*p, sum w*l, sum w]
# ---------------------------------------------------------------------------

def _cm_stats_kernel(n_valid, num_classes, spr, tile_rows, blk_per_core, weighted,
                     logits_ref, labels_ref, *rest):
    if weighted:
        w_ref, out_ref = rest
    else:
        (out_ref,) = rest

    core = pl.program_id(0)
    step = pl.program_id(1)

    @pl.when(step == 0)
    def _init():
        out_ref[...] = jnp.zeros_like(out_ref)

    # Logical (unclamped) row-block of this grid point.  The BlockSpec index_map clamps
    # the DMA to stay in bounds; the sample mask below (derived from this logical index)
    # keeps ghost / partial tiles from contributing.
    rb = core * blk_per_core + step
    base = rb * (tile_rows * spr)          # first sample id covered by this tile
    tile_samples = tile_rows * spr

    # ---- argmax over the C interleaved class lanes (first-occurrence tie-break) ----
    logits = logits_ref[...]                                    # (tile_rows, 128), native dtype
    m = logits
    idx = jnp.zeros(logits.shape, jnp.float32)
    for d in range(1, num_classes):
        v = _shift_lanes_left(logits, d)                        # class-d logit at base lanes
        better = v > m
        idx = jnp.where(better, float(d), idx)
        m = jnp.where(better, v, m)

    # Compact the argmax index from base lanes (lane % C == 0) into the labels' sample-
    # dense (tile_rows, spr) layout with one tiny bf16 selection matmul (exact: inputs
    # are small integers / {0,1}, MXU is otherwise idle).
    rows_i = jax.lax.broadcasted_iota(jnp.int32, (LANES, spr), 0)
    cols_i = jax.lax.broadcasted_iota(jnp.int32, (LANES, spr), 1)
    sel = (rows_i == cols_i * num_classes).astype(jnp.bfloat16)
    preds = jnp.dot(idx.astype(jnp.bfloat16), sel,
                    preferred_element_type=jnp.float32)         # (tile_rows, spr)

    labels = labels_ref[...].astype(jnp.float32)                # (tile_rows, spr)
    w = w_ref[...].astype(jnp.float32) if weighted else None

    def _accumulate(p, y, wv):
        wp = p if wv is None else wv * p
        wy = y if wv is None else wv * y
        sw = (jnp.zeros((1, spr), jnp.float32) if wv is None
              else jnp.sum(wv, axis=0, keepdims=True))
        part = jnp.concatenate(
            [jnp.sum(wp * y, axis=0, keepdims=True),    # sum w*p*l
             jnp.sum(wp, axis=0, keepdims=True),        # sum w*p
             jnp.sum(wy, axis=0, keepdims=True),        # sum w*l
             sw],                                       # sum w (unused when unweighted)
            axis=0)                                     # (4, spr) lane-wide partial sums
        out_ref[...] += part[None]

    @pl.when(base + tile_samples <= n_valid)            # fully valid tile: no masking
    def _full():
        _accumulate(preds, labels, w)

    @pl.when(base + tile_samples > n_valid)             # tail / ghost tile: mask by sample id
    def _partial():
        r_i = jax.lax.broadcasted_iota(jnp.int32, (tile_rows, spr), 0)
        l_i = jax.lax.broadcasted_iota(jnp.int32, (tile_rows, spr), 1)
        valid = (base + r_i * spr + l_i) < n_valid
        y = jnp.where(valid, labels, 0.0)
        wv = valid.astype(jnp.float32) if w is None else jnp.where(valid, w, 0.0)
        _accumulate(preds, y, wv)


# ---------------------------------------------------------------------------
# Wrapper
# ---------------------------------------------------------------------------

def _cm_sufficient_stats(logits, labels, weight, max_tile_rows=MAX_TILE_ROWS):
    """Streaming [sum w*p*l, sum w*p, sum w*l, sum w] over all samples (f32, shape (4,))."""
    n, c = logits.shape
    if c > LANES:
        # TODO(synk): classes spanning more than one 128-lane register need another slab
        #             layout; not implemented (domiknows binary concepts use C == 2).
        raise NotImplementedError("C > 128 not supported")
    if LANES % c != 0:
        # Pad the class axis up to the next power of two (divides 128) with -max so the
        # padded classes can never win the argmax.  Copies logits only for odd C.
        c_pad = 1 << (c - 1).bit_length()
        if jnp.issubdtype(logits.dtype, jnp.floating):
            fill = float(jnp.finfo(logits.dtype).min)
        else:
            fill = int(jnp.iinfo(logits.dtype).min)
        logits = jnp.pad(logits, ((0, 0), (0, c_pad - c)), constant_values=fill)
        c = c_pad
    spr = LANES // c                        # samples per 128-lane slab row

    n_pad = _round_up(n, spr)
    if n_pad != n:
        # TODO(synk): this pad copies the streams; only hit when N % (128 // C) != 0.
        logits = jnp.pad(logits, ((0, n_pad - n), (0, 0)))
        labels = jnp.pad(labels, (0, n_pad - n))
        if weight is not None:
            weight = jnp.pad(weight, (0, n_pad - n))

    rows = n_pad // spr
    slab = logits.reshape(rows, LANES)      # contiguous reshape: no HBM copy
    lab2 = labels.reshape(rows, spr)

    max_tile_rows = max(8, _round_up(max_tile_rows, 8))
    if rows % 8 == 0 or rows >= 8:
        tile_rows = min(max_tile_rows, _round_up(rows, 8))
    else:
        tile_rows = rows                    # tiny input: block extent == full array extent
    n_blk = -(-rows // tile_rows)
    blk_per_core = -(-n_blk // NSPLIT)

    def in_map(core, i):                    # clamp: ghost blocks re-read the last block;
        return (jnp.minimum(core * blk_per_core + i, n_blk - 1), 0)   # masked in-kernel

    inputs = [slab, lab2]
    in_specs = [pl.BlockSpec((tile_rows, LANES), in_map),
                pl.BlockSpec((tile_rows, spr), in_map)]
    if weight is not None:
        inputs.append(weight.reshape(rows, spr))
        in_specs.append(pl.BlockSpec((tile_rows, spr), in_map))

    in_bytes = sum(int(np.prod(x.shape)) * x.dtype.itemsize for x in inputs)
    cost = pl.CostEstimate(flops=int(n_pad) * (2 * c + 8) + int(rows) * 2 * LANES * spr,
                           transcendentals=0,
                           bytes_accessed=in_bytes + NSPLIT * 4 * spr * 4)

    out = pl.pallas_call(
        functools.partial(_cm_stats_kernel, n, c, spr, tile_rows, blk_per_core,
                          weight is not None),
        out_shape=jax.ShapeDtypeStruct((NSPLIT, 4, spr), jnp.float32),
        grid=(NSPLIT, blk_per_core),
        in_specs=in_specs,
        out_specs=pl.BlockSpec((1, 4, spr), lambda core, i: (core, 0, 0)),
        compiler_params=pltpu.CompilerParams(
            dimension_semantics=("parallel", "arbitrary"),
            vmem_limit_bytes=32 * 1024 * 1024),
        cost_estimate=cost,
    )(*inputs)

    return jnp.sum(out, axis=(0, 2))        # (4,) = [sum wpl, sum wp, sum wl, sum w]


def prf1_tracker_forward(batches, weight=None, max_tile_rows=MAX_TILE_ROWS):
    """PRF1Tracker.value() over a list of (logits, labels) datanode batches.

    batches : list of (logits (n_i, C), labels (n_i,)) — native dtypes are kept.
    weight  : optional per-item weight over the concatenated batch (shape (sum n_i,)).
    Returns {'P','R','F1','accuracy','CM':{'TP','FP','TN','FN'}} of float32 scalars.
    """
    # Glue replacing MetricTracker's Python list + wrap_batch: concatenate batches.
    logits = jnp.concatenate([jnp.asarray(l) for l, _ in batches], axis=0)
    labels = jnp.concatenate([jnp.asarray(t) for _, t in batches], axis=0)
    n = logits.shape[0]
    if weight is not None:
        weight = jnp.broadcast_to(jnp.asarray(weight), (n,))

    s_wpl, s_wp, s_wl, s_w = _cm_sufficient_stats(logits, labels, weight,
                                                  max_tile_rows=max_tile_rows)
    if weight is None:
        s_w = jnp.float32(n)                # sum(w) is a trace-time constant: no w stream

    tp = s_wpl
    fp = s_wp - tp
    fn = s_wl - tp
    tn = s_w - s_wp - s_wl + s_wpl

    tp_nz = tp != 0.0                       # torch `if tp:` -> tensor truthiness
    p = jnp.where(tp_nz, tp / (tp + fp), 0.0)
    r = jnp.where(tp_nz, tp / (tp + fn), 0.0)
    f1 = jnp.where(tp_nz, 2.0 * p * r / (p + r), 0.0)
    total = tp + fp + fn + tn
    accuracy = jnp.where(total != 0.0, (tp + tn) / total, 0.0)

    return {"P": p, "R": r, "F1": f1, "accuracy": accuracy,
            "CM": {"TP": tp, "FP": fp, "TN": tn, "FN": fn}}


# ---------------------------------------------------------------------------
# Pure-JAX reference mirroring the PyTorch module, and checks
# ---------------------------------------------------------------------------

def _reference(batches, weight=None):
    logits = jnp.concatenate([jnp.asarray(l) for l, _ in batches], axis=0)
    labels = jnp.concatenate([jnp.asarray(t) for _, t in batches], axis=0).astype(jnp.float32)
    preds = jnp.argmax(logits, axis=-1).astype(jnp.float32)
    if weight is None:
        w = jnp.ones_like(labels)
    else:
        w = jnp.broadcast_to(jnp.asarray(weight, jnp.float32), labels.shape)
    tp = jnp.sum(preds * labels * w)
    fp = jnp.sum(preds * (1 - labels) * w)
    tn = jnp.sum((1 - preds) * (1 - labels) * w)
    fn = jnp.sum((1 - preds) * labels * w)
    if float(tp) != 0.0:
        p = tp / (tp + fp)
        r = tp / (tp + fn)
        f1 = 2 * p * r / (p + r)
    else:
        p = r = f1 = jnp.zeros_like(tp)
    acc = (tp + tn) / (tp + fp + fn + tn)
    return {"P": p, "R": r, "F1": f1, "accuracy": acc,
            "CM": {"TP": tp, "FP": fp, "TN": tn, "FN": fn}}


def _check(result, ref):
    for k in ("P", "R", "F1", "accuracy"):
        np.testing.assert_allclose(np.asarray(result[k]), np.asarray(ref[k]),
                                   rtol=1e-5, atol=1e-5)
    for k in ("TP", "FP", "TN", "FN"):
        np.testing.assert_allclose(np.asarray(result["CM"][k]), np.asarray(ref["CM"][k]),
                                   rtol=1e-5, atol=1e-3)


if __name__ == "__main__":
    key = jax.random.PRNGKey(0)
    keys = jax.random.split(key, 12)

    # 1) Binary concept (domiknows default): two datanode batches, f32 logits (64, 2).
    logits1 = jax.random.normal(keys[0], (64, 2), jnp.float32)
    labels1 = (jax.random.uniform(keys[1], (64,)) > 0.5).astype(jnp.float32)
    logits2 = jax.random.normal(keys[2], (64, 2), jnp.float32)
    labels2 = (jax.random.uniform(keys[3], (64,)) > 0.5).astype(jnp.float32)
    batches = [(logits1, labels1), (logits2, labels2)]
    res = prf1_tracker_forward(batches)
    jax.block_until_ready(res)
    _check(res, _reference(batches))

    # 2) Weighted binary case (exercises the explicit weight stream).
    w = jax.random.uniform(keys[4], (128,), jnp.float32) + 0.5
    res_w = prf1_tracker_forward(batches, weight=w)
    jax.block_until_ready(res_w)
    _check(res_w, _reference(batches, weight=w))

    # 3) bf16 logits + int32 labels: native-dtype streams, casts happen in-kernel.
    batches_bf = [(l.astype(jnp.bfloat16), t.astype(jnp.int32)) for l, t in batches]
    res_bf = prf1_tracker_forward(batches_bf)
    jax.block_until_ready(res_bf)
    _check(res_bf, _reference(batches_bf))

    # 4) Multiclass logits (C = 4) with ragged N = 40: exercises the interleaved argmax,
    #    the selection-matmul compaction and the in-kernel tail mask (index-weighted
    #    "counts", faithfully mirroring the PyTorch formulas for C > 2).
    logits3 = jax.random.normal(keys[5], (40, 4), jnp.float32)
    labels3 = (jax.random.uniform(keys[6], (40,)) > 0.5).astype(jnp.float32)
    res_m = prf1_tracker_forward([(logits3, labels3)])
    jax.block_until_ready(res_m)
    _check(res_m, _reference([(logits3, labels3)]))

    # 5) C = 3 (does not divide 128): exercises the class-padding path.
    logits4 = jax.random.normal(keys[7], (48, 3), jnp.float32)
    labels4 = (jax.random.uniform(keys[8], (48,)) > 0.5).astype(jnp.float32)
    res_c3 = prf1_tracker_forward([(logits4, labels4)])
    jax.block_until_ready(res_c3)
    _check(res_c3, _reference([(logits4, labels4)]))

    # 6) Larger weighted run with a small tile cap: multi-block accumulation and the
    #    megacore row split both see real work (grid = (2, 2)).
    logits5 = jax.random.normal(keys[9], (4096, 2), jnp.float32)
    labels5 = (jax.random.uniform(keys[10], (4096,)) > 0.5).astype(jnp.float32)
    w5 = jax.random.uniform(keys[11], (4096,), jnp.float32) + 0.5
    res_big = prf1_tracker_forward([(logits5, labels5)], weight=w5, max_tile_rows=16)
    jax.block_until_ready(res_big)
    _check(res_big, _reference([(logits5, labels5)], weight=w5))

    print("KERNEL_OK")
</pallas_src>

<mosaic_0001>
module attributes {stable_mosaic.version = 11 : i64} {
  func.func @_cm_stats_kernel(%arg0: i32, %arg1: i32, %arg2: memref<2x128xf32, #tpu.memory_space<vmem>>, %arg3: memref<2x64xf32, #tpu.memory_space<vmem>>, %arg4: memref<1x4x64xf32, #tpu.memory_space<vmem>>) attributes {dimension_semantics = [#tpu.dimension_semantics<parallel>, #tpu.dimension_semantics<arbitrary>], iteration_bounds = array<i64: 2, 1>, scalar_prefetch = 0 : i64, scratch_operands = 0 : i64, tpu.core_type = #tpu.core_type<tc>, window_params = [{transform_indices = @transform_0, window_bounds = array<i64: 2, 128>}, {transform_indices = @transform_1, window_bounds = array<i64: 2, 64>}, {transform_indices = @transform_2, window_bounds = array<i64: 1, 4, 64>}]} {
    %c0_i32 = arith.constant 0 : i32
    %0 = arith.cmpi eq, %arg1, %c0_i32 : i32
    %1 = arith.extui %0 : i1 to i32
    %c0_i32_0 = arith.constant 0 : i32
    %2 = arith.cmpi ne, %1, %c0_i32_0 : i32
    scf.if %2 {
      %cst_12 = arith.constant 0.000000e+00 : f32
      %33 = vector.broadcast %cst_12 : f32 to vector<1x4x64xf32>
      %c0_13 = arith.constant 0 : index
      %c0_14 = arith.constant 0 : index
      %c0_15 = arith.constant 0 : index
      %34 = vector.load %arg4[%c0_13, %c0_14, %c0_15] : memref<1x4x64xf32, #tpu.memory_space<vmem>>, vector<1x4x64xf32>
      tpu.vector_store %arg4[%c0_13, %c0_14, %c0_15], %33 {strides = array<i32>} : memref<1x4x64xf32, #tpu.memory_space<vmem>>, vector<1x4x64xf32>,
    } else {
    }
    %c1_i32 = arith.constant 1 : i32
    %3 = arith.muli %arg0, %c1_i32 : i32
    %4 = arith.addi %3, %arg1 : i32
    %c128_i32 = arith.constant 128 : i32
    %5 = arith.muli %4, %c128_i32 : i32
    %c0 = arith.constant 0 : index
    %c0_1 = arith.constant 0 : index
    %6 = vector.load %arg2[%c0, %c0_1] : memref<2x128xf32, #tpu.memory_space<vmem>>, vector<2x128xf32>
    %cst = arith.constant 0.000000e+00 : f32
    %7 = vector.broadcast %cst : f32 to vector<2x128xf32>
    %8 = vector.extract_strided_slice %6 {offsets = [0, 1], sizes = [2, 127], strides = [1, 1]} : vector<2x128xf32> to vector<2x127xf32>
    %9 = vector.extract_strided_slice %6 {offsets = [0, 0], sizes = [2, 1], strides = [1, 1]} : vector<2x128xf32> to vector<2x1xf32>
    %10 = tpu.concatenate %8, %9 in 1 : vector<2x127xf32>, vector<2x1xf32> -> vector<2x128xf32>
    %11 = arith.cmpf ogt, %10, %6 : vector<2x128xf32>
    %cst_2 = arith.constant 1.000000e+00 : f32
    %12 = vector.broadcast %cst_2 : f32 to vector<2x128xf32>
    %13 = arith.select %11, %12, %7 : vector<2x128xi1>, vector<2x128xf32>
    %14 = tpu.iota {dimensions = array<i32: 0>} : vector<128x64xi32>
    %15 = tpu.iota {dimensions = array<i32: 1>} : vector<128x64xi32>
    %c2_i32 = arith.constant 2 : i32
    %16 = vector.broadcast %c2_i32 : i32 to vector<128x64xi32>
    %17 = arith.muli %15, %16 : vector<128x64xi32>
    %18 = arith.cmpi eq, %14, %17 : vector<128x64xi32>
    %19 = arith.extui %18 : vector<128x64xi1> to vector<128x64xi32>
    %20 = arith.sitofp %19 : vector<128x64xi32> to vector<128x64xf32>
    %21 = arith.truncf %20 : vector<128x64xf32> to vector<128x64xbf16>
    %22 = arith.truncf %13 : vector<2x128xf32> to vector<2x128xbf16>
    %cst_3 = arith.constant dense<0.000000e+00> : vector<2x64xf32>
    %23 = tpu.matmul %22, %21, %cst_3 {dimension_numbers = #tpu.dot_dimension_numbers<[1], [0], [0], [1], [0, 0, 1, 1], [], []>} : vector<2x128xbf16>, vector<128x64xbf16>, vector<2x64xf32> -> vector<2x64xf32>
    %c0_4 = arith.constant 0 : index
    %c0_5 = arith.constant 0 : index
    %24 = vector.load %arg3[%c0_4, %c0_5] : memref<2x64xf32, #tpu.memory_space<vmem>>, vector<2x64xf32>
    %c128_i32_6 = arith.constant 128 : i32
    %25 = arith.addi %5, %c128_i32_6 : i32
    %c128_i32_7 = arith.constant 128 : i32
    %26 = arith.cmpi sle, %25, %c128_i32_7 : i32
    %27 = arith.extui %26 : i1 to i32
    %c0_i32_8 = arith.constant 0 : i32
    %28 = arith.cmpi ne, %27, %c0_i32_8 : i32
    scf.if %28 {
      %cst_12 = arith.constant 0.000000e+00 : f32
      %33 = vector.broadcast %cst_12 : f32 to vector<1x64xf32>
      %34 = arith.mulf %23, %24 : vector<2x64xf32>
      %cst_13 = arith.constant dense<0.000000e+00> : vector<64xf32>
      %35 = vector.multi_reduction <add>, %34, %cst_13 [0] : vector<2x64xf32> to vector<64xf32>
      %36 = vector.shape_cast %35 : vector<64xf32> to vector<1x64xf32>
      %cst_14 = arith.constant dense<0.000000e+00> : vector<64xf32>
      %37 = vector.multi_reduction <add>, %23, %cst_14 [0] : vector<2x64xf32> to vector<64xf32>
      %38 = vector.shape_cast %37 : vector<64xf32> to vector<1x64xf32>
      %cst_15 = arith.constant dense<0.000000e+00> : vector<64xf32>
      %39 = vector.multi_reduction <add>, %24, %cst_15 [0] : vector<2x64xf32> to vector<64xf32>
      %40 = vector.shape_cast %39 : vector<64xf32> to vector<1x64xf32>
      %41 = tpu.concatenate %36, %38, %40, %33 in 0 : vector<1x64xf32>, vector<1x64xf32>, vector<1x64xf32>, vector<1x64xf32> -> vector<4x64xf32>
      %c0_16 = arith.constant 0 : index
      %c0_17 = arith.constant 0 : index
      %c0_18 = arith.constant 0 : index
      %42 = vector.load %arg4[%c0_16, %c0_17, %c0_18] : memref<1x4x64xf32, #tpu.memory_space<vmem>>, vector<1x4x64xf32>
      %43 = vector.shape_cast %41 : vector<4x64xf32> to vector<1x4x64xf32>
      %44 = arith.addf %42, %43 : vector<1x4x64xf32>
      %c0_19 = arith.constant 0 : index
      %c0_20 = arith.constant 0 : index
      %c0_21 = arith.constant 0 : index
      %45 = vector.load %arg4[%c0_19, %c0_20, %c0_21] : memref<1x4x64xf32, #tpu.memory_space<vmem>>, vector<1x4x64xf32>
      tpu.vector_store %arg4[%c0_19, %c0_20, %c0_21], %44 {strides = array<i32>} : memref<1x4x64xf32, #tpu.memory_space<vmem>>, vector<1x4x64xf32>,
    } else {
    }
    %c128_i32_9 = arith.constant 128 : i32
    %29 = arith.addi %5, %c128_i32_9 : i32
    %c128_i32_10 = arith.constant 128 : i32
    %30 = arith.cmpi sgt, %29, %c128_i32_10 : i32
    %31 = arith.extui %30 : i1 to i32
    %c0_i32_11 = arith.constant 0 : i32
    %32 = arith.cmpi ne, %31, %c0_i32_11 : i32
    scf.if %32 {
      %33 = tpu.iota {dimensions = array<i32: 0>} : vector<2x64xi32>
      %34 = tpu.iota {dimensions = array<i32: 1>} : vector<2x64xi32>
      %c64_i32 = arith.constant 64 : i32
      %35 = vector.broadcast %c64_i32 : i32 to vector<2x64xi32>
      %36 = arith.muli %33, %35 : vector<2x64xi32>
      %37 = vector.broadcast %5 : i32 to vector<2x64xi32>
      %38 = arith.addi %37, %36 : vector<2x64xi32>
      %39 = arith.addi %38, %34 : vector<2x64xi32>
      %c128_i32_12 = arith.constant 128 : i32
      %40 = vector.broadcast %c128_i32_12 : i32 to vector<2x64xi32>
      %41 = arith.cmpi slt, %39, %40 : vector<2x64xi32>
      %cst_13 = arith.constant 0.000000e+00 : f32
      %42 = vector.broadcast %cst_13 : f32 to vector<2x64xf32>
      %43 = arith.select %41, %24, %42 : vector<2x64xi1>, vector<2x64xf32>
      %44 = arith.extui %41 : vector<2x64xi1> to vector<2x64xi32>
      %45 = arith.sitofp %44 : vector<2x64xi32> to vector<2x64xf32>
      %46 = arith.mulf %45, %23 : vector<2x64xf32>
      %47 = arith.mulf %45, %43 : vector<2x64xf32>
      %cst_14 = arith.constant dense<0.000000e+00> : vector<64xf32>
      %48 = vector.multi_reduction <add>, %45, %cst_14 [0] : vector<2x64xf32> to vector<64xf32>
      %49 = vector.shape_cast %48 : vector<64xf32> to vector<1x64xf32>
      %50 = arith.mulf %46, %43 : vector<2x64xf32>
      %cst_15 = arith.constant dense<0.000000e+00> : vector<64xf32>
      %51 = vector.multi_reduction <add>, %50, %cst_15 [0] : vector<2x64xf32> to vector<64xf32>
      %52 = vector.shape_cast %51 : vector<64xf32> to vector<1x64xf32>
      %cst_16 = arith.constant dense<0.000000e+00> : vector<64xf32>
      %53 = vector.multi_reduction <add>, %46, %cst_16 [0] : vector<2x64xf32> to vector<64xf32>
      %54 = vector.shape_cast %53 : vector<64xf32> to vector<1x64xf32>
      %cst_17 = arith.constant dense<0.000000e+00> : vector<64xf32>
      %55 = vector.multi_reduction <add>, %47, %cst_17 [0] : vector<2x64xf32> to vector<64xf32>
      %56 = vector.shape_cast %55 : vector<64xf32> to vector<1x64xf32>
      %57 = tpu.concatenate %52, %54, %56, %49 in 0 : vector<1x64xf32>, vector<1x64xf32>, vector<1x64xf32>, vector<1x64xf32> -> vector<4x64xf32>
      %c0_18 = arith.constant 0 : index
      %c0_19 = arith.constant 0 : index
      %c0_20 = arith.constant 0 : index
      %58 = vector.load %arg4[%c0_18, %c0_19, %c0_20] : memref<1x4x64xf32, #tpu.memory_space<vmem>>, vector<1x4x64xf32>
      %59 = vector.shape_cast %57 : vector<4x64xf32> to vector<1x4x64xf32>
      %60 = arith.addf %58, %59 : vector<1x4x64xf32>
      %c0_21 = arith.constant 0 : index
      %c0_22 = arith.constant 0 : index
      %c0_23 = arith.constant 0 : index
      %61 = vector.load %arg4[%c0_21, %c0_22, %c0_23] : memref<1x4x64xf32, #tpu.memory_space<vmem>>, vector<1x4x64xf32>
      tpu.vector_store %arg4[%c0_21, %c0_22, %c0_23], %60 {strides = array<i32>} : memref<1x4x64xf32, #tpu.memory_space<vmem>>, vector<1x4x64xf32>,
    } else {
    }
    return
  }
  func.func @transform_0(%arg0: i32, %arg1: i32) -> (i32, i32) {
    %c1_i32 = arith.constant 1 : i32
    %0 = arith.muli %arg0, %c1_i32 : i32
    %1 = arith.addi %0, %arg1 : i32
    %c0_i32 = arith.constant 0 : i32
    %2 = arith.minsi %1, %c0_i32 : i32
    %c0_i32_0 = arith.constant 0 : i32
    %c0_i32_1 = arith.constant 0 : i32
    return %2, %c0_i32_0 : i32, i32
  }
  func.func @transform_1(%arg0: i32, %arg1: i32) -> (i32, i32) {
    %c1_i32 = arith.constant 1 : i32
    %0 = arith.muli %arg0, %c1_i32 : i32
    %1 = arith.addi %0, %arg1 : i32
    %c0_i32 = arith.constant 0 : i32
    %2 = arith.minsi %1, %c0_i32 : i32
    %c0_i32_0 = arith.constant 0 : i32
    %c0_i32_1 = arith.constant 0 : i32
    return %2, %c0_i32_0 : i32, i32
  }
  func.func @transform_2(%arg0: i32, %arg1: i32) -> (i32, i32, i32) {
    %c0_i32 = arith.constant 0 : i32
    %c0_i32_0 = arith.constant 0 : i32
    %c0_i32_1 = arith.constant 0 : i32
    return %arg0, %c0_i32, %c0_i32_0 : i32, i32, i32
  }
}

</mosaic_0001>

<llo_original>
// kernel: tpu_custom_call.1
$region0: #{tpu_custom_call.1}
  #allocation0 [shape = 'u32[]', space=smem, size = 0x4, offset = 0x4, fixed_abs, tag = 'smem constant byte address 0x4 - core index']
  #allocation1 [shape = 'u32[144,128]{1,0:T(1,128)}', space=vmem, size = 0x12000, scoped, tag = 'internal scratch']
  %s0 = inlined_call_operand.hbm [shape: f32[2,128], index: 0, kind: input, shape index: {}]
  %s1 = inlined_call_operand.vmem [shape: f32[2,64], index: 1, kind: input, shape index: {}]
  %s2 = inlined_call_operand.hbm [shape: f32[2,4,64], index: 2, kind: output, shape index: {}]
  %s3 = sld [smem:[#allocation0]]
  $region57: #{tpu_custom_call.1} parent=0
    _
  %s5 = ssub.s32 1, %s3
  %s6 = scalar_select 0, %s5, %s3
  $region1: #{tpu_custom_call.1} parent=0
    #allocation2 [shape = 'u8[2048]{0}', space=vmem, size = 0x800, scoped, tag = 'input window, operand 0']
    #allocation3 [shape = 's32[2]{0}', space=sflag, size = 0x8, scoped, tag = 'scoped memory for tpu_custom_call.1']
    #allocation4 [shape = 's32[2]{0}', space=sflag, size = 0x8, scoped, tag = 'scoped memory for tpu_custom_call.1']
    #allocation5 [shape = 'u8[4096]{0}', space=vmem, size = 0x1000, scoped, tag = 'output window, operand 0']
    %7 = vsyncpa [#allocation3], 0
    %s8 = scalar_lea.sflag [#allocation3], 1
    %9 = vsyncpa %s8, 0
    %10 = vsyncpa [#allocation4], 0
    %s11 = scalar_lea.sflag [#allocation4], 1
    %12 = vsyncpa %s11, 0
    loop: start=0, step=1, limit=4
    $region2: #{tpu_custom_call.1} parent=1 // loop_pre_header
      _
    $region3: #{tpu_custom_call.1} parent=1 // loop_header
      %s14 = sphi 0, %s18
      %p15 = scmp.ge.s32.totalorder %s14, 4
      %s21 = sphi 0, %s33
      %s22 = sphi 0, %s29
      %s23 = sphi 0, %s21
      %s24 = sphi 0, %s22
      %s25 = sphi 0, %s23
      %s26 = sphi 0, %s24
      %s42 = sphi 0, %s44
      %s45 = sphi 0, %s42
      %s46 = sphi 0, %s45
      %s62 = sphi 0, %s46
      %s74 = sphi 0, %s76
      %s77 = sphi 0, %s74
      %s78 = sphi 0, %s77
      %s94 = sphi 0, %s78
      %s100 = sphi 0, %s102
      %s103 = sphi 0, %s100
      %s104 = sphi 0, %s103
      %s120 = sphi 0, %s104
    $region4: #{tpu_custom_call.1} parent=1 // loop_header_branch
      %17 = sbr.rel (%p15) target = $region8
    $region5: #{tpu_custom_call.1} parent=1 // loop_body
      %s19 = ssub.s32 %s14, 1
      %s20 = ssub.s32 %s14, 2
      %s27 = sadd.s32 1, %s22
      %p28 = scmp.ge.s32.totalorder %s27, 1
      %s29 = scalar_select %p28, 0, %s27
      %s30 = sadd.s32 1, %s21
      %s31 = scalar_select %p28, %s30, %s21
      %p32 = scmp.ge.s32.totalorder %s31, 2
      %s33 = scalar_select %p32, 0, %s31
      %s34 = sadd.s32 %s21, %s22
      %p35 = scmp.lt.s32.totalorder %s34, 0
      %s36 = scalar_select %p35, %s34, 0
      %s37 = sadd.s32 %s33, %s29
      %p38 = scmp.lt.s32.totalorder %s37, 0
      %s39 = scalar_select %p38, %s37, 0
      %s40 = ssub.s32 %s36, %s39
      %p41 = scmp.eq.s32.totalorder %s40, 0
      %s43 = sadd.s32 %s42, 1
      %s44 = scalar_select %p41, %s42, %s43
      %p47 = pneg %p41
      %p48 = scmp.eq.s32.totalorder %s14, 1
      %p49 = por %p47, %p48
      %p50 = scmp.ne.s32.totalorder %s42, %s45
      %p51 = scmp.eq.s32.totalorder %s14, 0
      %p52 = por %p50, %p51
      %p53 = scmp.ne.s32.totalorder %s42, %s45
      %p54 = scmp.eq.s32.totalorder %s19, 1
      %p55 = por %p53, %p54
      %p56 = scmp.ne.s32.totalorder %s45, %s46
      %p57 = scmp.eq.s32.totalorder %s19, 0
      %p58 = por %p56, %p57
      %p59 = scmp.ne.s32.totalorder %s45, %s46
      %p60 = scmp.eq.s32.totalorder %s20, 1
      %p61 = por %p59, %p60
      %p63 = scmp.ne.s32.totalorder %s46, %s62
      %p64 = scmp.eq.s32.totalorder %s20, 0
      %p65 = por %p63, %p64
      %s66 = sadd.s32 %s21, %s22
      %p67 = scmp.lt.s32.totalorder %s66, 0
      %s68 = scalar_select %p67, %s66, 0
      %s69 = sadd.s32 %s33, %s29
      %p70 = scmp.lt.s32.totalorder %s69, 0
      %s71 = scalar_select %p70, %s69, 0
      %s72 = ssub.s32 %s68, %s71
      %p73 = scmp.eq.s32.totalorder %s72, 0
      %s75 = sadd.s32 %s74, 1
      %s76 = scalar_select %p73, %s74, %s75
      %p79 = pneg %p73
      %p80 = scmp.eq.s32.totalorder %s14, 1
      %p81 = por %p79, %p80
      %p82 = scmp.ne.s32.totalorder %s74, %s77
      %p83 = scmp.eq.s32.totalorder %s14, 0
      %p84 = por %p82, %p83
      %p85 = scmp.ne.s32.totalorder %s74, %s77
      %p86 = scmp.eq.s32.totalorder %s19, 1
      %p87 = por %p85, %p86
      %p88 = scmp.ne.s32.totalorder %s77, %s78
      %p89 = scmp.eq.s32.totalorder %s19, 0
      %p90 = por %p88, %p89
      %p91 = scmp.ne.s32.totalorder %s77, %s78
      %p92 = scmp.eq.s32.totalorder %s20, 1
      %p93 = por %p91, %p92
      %p95 = scmp.ne.s32.totalorder %s78, %s94
      %p96 = scmp.eq.s32.totalorder %s20, 0
      %p97 = por %p95, %p96
      %s98 = ssub.s32 %s21, %s33
      %p99 = scmp.eq.s32.totalorder %s98, 0
      %s101 = sadd.s32 %s100, 1
      %s102 = scalar_select %p99, %s100, %s101
      %p105 = pneg %p99
      %p106 = scmp.eq.s32.totalorder %s14, 1
      %p107 = por %p105, %p106
      %p108 = scmp.ne.s32.totalorder %s100, %s103
      %p109 = scmp.eq.s32.totalorder %s14, 0
      %p110 = por %p108, %p109
      %p111 = scmp.ne.s32.totalorder %s100, %s103
      %p112 = scmp.eq.s32.totalorder %s19, 1
      %p113 = por %p111, %p112
      %p114 = scmp.ne.s32.totalorder %s103, %s104
      %p115 = scmp.eq.s32.totalorder %s19, 0
      %p116 = por %p114, %p115
      %p117 = scmp.ne.s32.totalorder %s103, %s104
      %p118 = scmp.eq.s32.totalorder %s20, 1
      %p119 = por %p117, %p118
      %p121 = scmp.ne.s32.totalorder %s104, %s120
      %p122 = scmp.eq.s32.totalorder %s20, 0
      %p123 = por %p121, %p122
      %p124 = scmp.le.s32.totalorder 1, %s14
      %p125 = scmp.lt.s32.totalorder %s14, 3
      %p126 = pnand %p124, %p125
      %p127 = pneg %p126
      // Predicated region
      $region9: #{tpu_custom_call.1} parent=5 // pred_check
        _
      $region10: #{tpu_custom_call.1} parent=5 // pred_check_branch
        %129 = sbr.rel (%p126) target = $region12
      $region11: #{tpu_custom_call.1} parent=5 // pred_region
        %s130 = ssub.s32 %s14, 1
      $region12: #{tpu_custom_call.1} parent=5 // pred_fallthru
        _
      %p131 = scmp.lt.s32.totalorder %s14, 2
      // Predicated region
      $region13: #{tpu_custom_call.1} parent=5 // pred_check
        %p132 = pneg %p131
      $region14: #{tpu_custom_call.1} parent=5 // pred_check_branch
        %134 = sbr.rel (%p132) target = $region16
      $region15: #{tpu_custom_call.1} parent=5 // pred_region
        // Predicated region
        $region17: #{tpu_custom_call.1} parent=15 // pred_check
          %p135 = pneg %p52
        $region18: #{tpu_custom_call.1} parent=15 // pred_check_branch
          %137 = sbr.rel (%p135) target = $region20
        $region19: #{tpu_custom_call.1} parent=15 // pred_region
          %s138 = sand.u32 %s42, 1
          %s139 = scalar_lea.sflag [#allocation3], %s138
          %s140 = sand.u32 %s42, 1
          %s141 = smul.addr %s140, 2
          %s142 = scalar_lea.vmem [#allocation2], %s141
          %s143 = sadd.s32 %s21, %s22
          %p144 = scmp.lt.s32.totalorder %s143, 0
          %s145 = scalar_select %p144, %s143, 0
          %s147 = ssub.s32 32, 32
          %148 = vsyncadd %s139, %s147
          %s149 = smul.addr %s145, 32
          %s150 = scalar_lea.hbm %s0, %s149
          %s152 = sshll.u32 %s142, 4
          %s153 = int_to_ptr.vmem [resolvable:$true] %s152
          %155 = dma.hbm_to_vmem [thread:$0]  %s150, 32, %s153, %s139
        $region20: #{tpu_custom_call.1} parent=15 // pred_fallthru
          _
        // Predicated region
        $region21: #{tpu_custom_call.1} parent=15 // pred_check
          %p156 = pneg %p84
        $region22: #{tpu_custom_call.1} parent=15 // pred_check_branch
          %158 = sbr.rel (%p156) target = $region24
        $region23: #{tpu_custom_call.1} parent=15 // pred_region
          %s159 = sadd.s32 %s21, %s22
          %p160 = scmp.lt.s32.totalorder %s159, 0
          %s161 = scalar_select %p160, %s159, 0
          %p162 = scmp.lt.s32.totalorder %s161, 0
          %s163 = scalar_select %p162, %s161, 0
          %s164 = smul.addr %s163, 2
          %s165 = scalar_lea.vmem %s1, %s164
          %s166 = sadd.s32 %s21, %s22
          %p167 = scmp.lt.s32.totalorder %s166, 0
          %s168 = scalar_select %p167, %s166, 0
        $region24: #{tpu_custom_call.1} parent=15 // pred_fallthru
          _
      $region16: #{tpu_custom_call.1} parent=5 // pred_fallthru
        _
      %p169 = scmp.le.s32.totalorder 1, %s14
      %p170 = scmp.lt.s32.totalorder %s14, 3
      %p171 = pnand %p169, %p170
      %p172 = pneg %p171
      // Predicated region
      $region25: #{tpu_custom_call.1} parent=5 // pred_check
        _
      $region26: #{tpu_custom_call.1} parent=5 // pred_check_branch
        %174 = sbr.rel (%p171) target = $region28
      $region27: #{tpu_custom_call.1} parent=5 // pred_region
        %s175 = ssub.s32 %s14, 1
        %s176 = sand.u32 %s45, 1
        %s177 = scalar_lea.sflag [#allocation3], %s176
        %s178 = sand.u32 %s45, 1
        %s179 = smul.addr %s178, 2
        %s180 = scalar_lea.vmem [#allocation2], %s179
        // Predicated region
        $region29: #{tpu_custom_call.1} parent=27 // pred_check
          %p181 = pneg %p58
        $region30: #{tpu_custom_call.1} parent=27 // pred_check_branch
          %183 = sbr.rel (%p181) target = $region32
        $region31: #{tpu_custom_call.1} parent=27 // pred_region
          %184 = dma.done %s177, 32
        $region32: #{tpu_custom_call.1} parent=27 // pred_fallthru
          _
        %s185 = sand.u32 %s45, 1
        %s186 = scalar_lea.sflag [#allocation3], %s185
        %s187 = sand.u32 %s45, 1
        %s188 = smul.addr %s187, 2
        %s189 = scalar_lea.vmem [#allocation2], %s188
        %p190 = pneg %p58
        %p191 = pneg %p55
        %s192 = sadd.s32 %s23, %s24
        %p193 = scmp.lt.s32.totalorder %s192, 0
        %s194 = scalar_select %p193, %s192, 0
        %p195 = scmp.lt.s32.totalorder %s194, 0
        %s196 = scalar_select %p195, %s194, 0
        %s197 = smul.addr %s196, 2
        %s198 = scalar_lea.vmem %s1, %s197
        %p199 = pneg %p90
        %p200 = pneg %p87
        %p201 = pneg %p116
        %p202 = pneg %p113
        %s203 = sand.u32 %s103, 1
        %s204 = scalar_lea.sflag [#allocation4], %s203
        %s205 = sand.u32 %s103, 1
        %s206 = smul.addr %s205, 4
        %s207 = scalar_lea.vmem [#allocation5], %s206
        %s208 = sadd.s32 %s23, %s24
        %p209 = scmp.lt.s32.totalorder %s208, 0
        %s210 = scalar_select %p209, %s208, 0
        %s211 = sadd.s32 %s23, %s24
        %p212 = scmp.lt.s32.totalorder %s211, 0
        %s213 = scalar_select %p212, %s211, 0
        %p214 = scmp.lt.s32.totalorder %s213, 0
        %s215 = scalar_select %p214, %s213, 0
        %s216 = smul.addr %s215, 2
        %s217 = scalar_lea.vmem %s1, %s216
        %s218 = sadd.s32 %s23, %s24
        %p219 = scmp.lt.s32.totalorder %s218, 0
        %s220 = scalar_select %p219, %s218, 0
        %p222 = scmp.eq.s32.totalorder %s24, 0
        // Predicated region
        $region33: #{tpu_custom_call.1} parent=27 // pred_check
          %p223 = pneg %p222
        $region34: #{tpu_custom_call.1} parent=27 // pred_check_branch
          %225 = sbr.rel (%p223) target = $region36
        $region35: #{tpu_custom_call.1} parent=27 // pred_region
          %vm226 = vcmask 519168
          %227 = vst.msk [vmem:[%s207] sm:$0xf] %vm226, 0.0
        $region36: #{tpu_custom_call.1} parent=27 // pred_fallthru
          _
        %s228 = sadd.s32 %s23, %s24
        %s229 = smul.u32 %s228, 128
        %v230 = vld [vmem:[%s180] sm:$0x3]
        %232 = vrot.lane.b32.xlu0 %v230, 127
        %v233 = vpop.permute.xlu0 %232
        %vm235 = vcmp.gt.f32.partialorder %v233, %v230
        %v236 = vsel %vm235, 1.0, 0.0
        %v237 = vlaneseq
        %v238 = vshrl.u32 %v237, 7
        %v239 = vadd.s32 %v238, 8
        %v240 = vadd.s32 %v238, 16
        %v241 = vadd.s32 %v238, 24
        %v242 = vadd.s32 %v238, 32
        %v243 = vadd.s32 %v238, 40
        %v244 = vadd.s32 %v238, 48
        %v245 = vadd.s32 %v238, 56
        %v246 = vadd.s32 %v238, 64
        %v247 = vadd.s32 %v238, 72
        %v248 = vadd.s32 %v238, 80
        %v249 = vadd.s32 %v238, 88
        %v250 = vadd.s32 %v238, 96
        %v251 = vadd.s32 %v238, 104
        %v252 = vadd.s32 %v238, 112
        %v253 = vadd.s32 %v238, 120
        %v254 = vlaneseq
        %v255 = vand.u32 %v254, 127
        %v256 = vmul.u32 %v255, 2
        %vm257 = vcmp.eq.s32.totalorder %v238, %v256
        %vm258 = vcmp.eq.s32.totalorder %v239, %v256
        %vm259 = vcmp.eq.s32.totalorder %v240, %v256
        %vm260 = vcmp.eq.s32.totalorder %v241, %v256
        %vm261 = vcmp.eq.s32.totalorder %v242, %v256
        %vm262 = vcmp.eq.s32.totalorder %v243, %v256
        %vm263 = vcmp.eq.s32.totalorder %v244, %v256
        %vm264 = vcmp.eq.s32.totalorder %v245, %v256
        %vm265 = vcmp.eq.s32.totalorder %v246, %v256
        %vm266 = vcmp.eq.s32.totalorder %v247, %v256
        %vm267 = vcmp.eq.s32.totalorder %v248, %v256
        %vm268 = vcmp.eq.s32.totalorder %v249, %v256
        %vm269 = vcmp.eq.s32.totalorder %v250, %v256
        %vm270 = vcmp.eq.s32.totalorder %v251, %v256
        %vm271 = vcmp.eq.s32.totalorder %v252, %v256
        %vm272 = vcmp.eq.s32.totalorder %v253, %v256
        %v273 = vsel %vm257, 1, 0
        %v274 = vsel %vm258, 1, 0
        %v275 = vsel %vm259, 1, 0
        %v276 = vsel %vm260, 1, 0
        %v277 = vsel %vm261, 1, 0
        %v278 = vsel %vm262, 1, 0
        %v279 = vsel %vm263, 1, 0
        %v280 = vsel %vm264, 1, 0
        %v281 = vsel %vm265, 1, 0
        %v282 = vsel %vm266, 1, 0
        %v283 = vsel %vm267, 1, 0
        %v284 = vsel %vm268, 1, 0
        %v285 = vsel %vm269, 1, 0
        %v286 = vsel %vm270, 1, 0
        %v287 = vsel %vm271, 1, 0
        %v288 = vsel %vm272, 1, 0
        %v289 = vcvt.s32.f32 %v273
        %v290 = vcvt.s32.f32 %v274
        %v291 = vcvt.s32.f32 %v275
        %v292 = vcvt.s32.f32 %v276
        %v293 = vcvt.s32.f32 %v277
        %v294 = vcvt.s32.f32 %v278
        %v295 = vcvt.s32.f32 %v279
        %v296 = vcvt.s32.f32 %v280
        %v297 = vcvt.s32.f32 %v281
        %v298 = vcvt.s32.f32 %v282
        %v299 = vcvt.s32.f32 %v283
        %v300 = vcvt.s32.f32 %v284
        %v301 = vcvt.s32.f32 %v285
        %v302 = vcvt.s32.f32 %v286
        %v303 = vcvt.s32.f32 %v287
        %v304 = vcvt.s32.f32 %v288
        %v305 = vpack.c.bf16 %v290, %v289
        %v306 = vpack.c.bf16 %v292, %v291
        %v307 = vpack.c.bf16 %v294, %v293
        %v308 = vpack.c.bf16 %v296, %v295
        %v309 = vpack.c.bf16 %v298, %v297
        %v310 = vpack.c.bf16 %v300, %v299
        %v311 = vpack.c.bf16 %v302, %v301
        %v312 = vpack.c.bf16 %v304, %v303
        %v313 = vpack.c.bf16 %v236, %v236
        %314 = vmatprep.subr.bf16.mxu0 0
        %315 = vmatpush1.bf16.msra.mxu0 %v305
        %316 = vmatprep.subr.bf16.mxu0 0
        %317 = vmatpush1.bf16.msra.mxu0 %v306
        %318 = vmatprep.subr.bf16.mxu0 0
        %319 = vmatpush1.bf16.msra.mxu0 %v307
        %320 = vmatprep.subr.bf16.mxu0 0
        %321 = vmatpush1.bf16.msra.mxu0 %v308
        %322 = vmatprep.subr.bf16.mxu0 0
        %323 = vmatpush1.bf16.msra.mxu0 %v309
        %324 = vmatprep.subr.bf16.mxu0 0
        %325 = vmatpush1.bf16.msra.mxu0 %v310
        %326 = vmatprep.subr.bf16.mxu0 0
        %327 = vmatpush1.bf16.msra.mxu0 %v311
        %328 = vmatprep.subr.bf16.mxu0 0
        %329 = vmatpush1.bf16.msra.mxu0 %v312
        %330 = vmatprep.subr.bf16.mxu0 0
        %331 = vmatpush1.bf16.msra.mxu0 0
        %332 = vmatprep.subr.bf16.mxu0 0
        %333 = vmatpush1.bf16.msra.mxu0 0
        %334 = vmatprep.subr.bf16.mxu0 0
        %335 = vmatpush1.bf16.msra.mxu0 0
        %336 = vmatprep.subr.bf16.mxu0 0
        %337 = vmatpush1.bf16.msra.mxu0 0
        %338 = vmatprep.subr.bf16.mxu0 0
        %339 = vmatpush1.bf16.msra.mxu0 0
        %340 = vmatprep.subr.bf16.mxu0 0
        %341 = vmatpush1.bf16.msra.mxu0 0
        %342 = vmatprep.subr.bf16.mxu0 0
        %343 = vmatpush1.bf16.msra.mxu0 0
        %344 = vmatprep.subr.bf16.mxu0 0
        %345 = vmatpush1.bf16.msra.mxu0 0
        %346 = vmatprep.mubr.bf16.mxu0 0
        %347 = vmatmul.mubr.bf16.gmra.mrb[0].mxu0 %v313
        %v348 = vpop.f32.mrb[0].mxu0
        %v349 = vadd.f32 0.0, %v348
        %v350 = vpop.f32.mrb[0].mxu0
        %v351 = vpop.f32.mrb[0].mxu0
        %v352 = vpop.f32.mrb[0].mxu0
        %353 = vdwg.mxu0
        %v354 = vld [vmem:[%s217] sm:$0x3]
        %s355 = sadd.s32 %s229, 128
        %p356 = scmp.le.s32.totalorder %s355, 128
        // Predicated region
        $region37: #{tpu_custom_call.1} parent=27 // pred_check
          %p357 = pneg %p356
        $region38: #{tpu_custom_call.1} parent=27 // pred_check_branch
          %359 = sbr.rel (%p357) target = $region40
        $region39: #{tpu_custom_call.1} parent=27 // pred_region
          %v360 = vmul.f32 %v349, %v354
          %vm361 = vcmask 517120
          %v362 = vsel %vm361, %v360, 0.0
          %v363 = vrot.slane %v362, 4
          %v364 = vadd.f32 %v362, %v363
          %v365 = vrot.slane %v364, 2
          %v366 = vadd.f32 %v364, %v365
          %v367 = vrot.slane %v366, 1
          %v368 = vadd.f32 %v366, %v367
          %v369 = vsel %vm361, %v349, 0.0
          %v370 = vrot.slane %v369, 4
          %v371 = vadd.f32 %v369, %v370
          %v372 = vrot.slane %v371, 2
          %v373 = vadd.f32 %v371, %v372
          %v374 = vrot.slane %v373, 1
          %v375 = vadd.f32 %v373, %v374
          %v376 = vsel %vm361, %v354, 0.0
          %v377 = vrot.slane %v376, 4
          %v378 = vadd.f32 %v376, %v377
          %v379 = vrot.slane %v378, 2
          %v380 = vadd.f32 %v378, %v379
          %v381 = vrot.slane %v380, 1
          %v382 = vadd.f32 %v380, %v381
          %vm383 = vcmask 1040384
          %v384 = vsel %vm383, %v368, %v375
          %vm385 = vcmask 1041408
          %v386 = vsel %vm385, %v384, %v382
          %vm387 = vcmask 1042432
          %v388 = vsel %vm387, %v386, 0.0
          %v389 = vld [vmem:[%s207] sm:$0xf]
          %v390 = vadd.f32 %v389, %v388
          %vm391 = vcmask 519168
          %392 = vst.msk [vmem:[%s207] sm:$0xf] %vm391, %v390
        $region40: #{tpu_custom_call.1} parent=27 // pred_fallthru
          _
        %p393 = scmp.gt.s32.totalorder %s355, 128
        // Predicated region
        $region41: #{tpu_custom_call.1} parent=27 // pred_check
          %p394 = pneg %p393
        $region42: #{tpu_custom_call.1} parent=27 // pred_check_branch
          %396 = sbr.rel (%p394) target = $region44
        $region43: #{tpu_custom_call.1} parent=27 // pred_region
          %v397 = vmul.u32 %v238, 64
          %v398 = vstv %s229
          %v399 = vadd.s32 %v398, %v397
          %v400 = vadd.s32 %v399, %v255
          %vm401 = vcmp.lt.s32.totalorder %v400, 128
          %v402 = vsel %vm401, %v354, 0.0
          %v403 = vsel %vm401, 1, 0
          %v404 = vcvt.s32.f32 %v403
          %v405 = vmul.f32 %v404, %v349
          %v406 = vmul.f32 %v404, %v402
          %vm407 = vcmask 517120
          %v408 = vsel %vm407, %v404, 0.0
          %v409 = vrot.slane %v408, 4
          %v410 = vadd.f32 %v408, %v409
          %v411 = vrot.slane %v410, 2
          %v412 = vadd.f32 %v410, %v411
          %v413 = vrot.slane %v412, 1
          %v414 = vadd.f32 %v412, %v413
          %v415 = vmul.f32 %v405, %v402
          %v416 = vsel %vm407, %v415, 0.0
          %v417 = vrot.slane %v416, 4
          %v418 = vadd.f32 %v416, %v417
          %v419 = vrot.slane %v418, 2
          %v420 = vadd.f32 %v418, %v419
          %v421 = vrot.slane %v420, 1
          %v422 = vadd.f32 %v420, %v421
          %v423 = vsel %vm407, %v405, 0.0
          %v424 = vrot.slane %v423, 4
          %v425 = vadd.f32 %v423, %v424
          %v426 = vrot.slane %v425, 2
          %v427 = vadd.f32 %v425, %v426
          %v428 = vrot.slane %v427, 1
          %v429 = vadd.f32 %v427, %v428
          %v430 = vsel %vm407, %v406, 0.0
          %v431 = vrot.slane %v430, 4
          %v432 = vadd.f32 %v430, %v431
          %v433 = vrot.slane %v432, 2
          %v434 = vadd.f32 %v432, %v433
          %v435 = vrot.slane %v434, 1
          %v436 = vadd.f32 %v434, %v435
          %vm437 = vcmask 1040384
          %v438 = vsel %vm437, %v422, %v429
          %vm439 = vcmask 1041408
          %v440 = vsel %vm439, %v438, %v436
          %vm441 = vcmask 1042432
          %v442 = vsel %vm441, %v440, %v414
          %v443 = vld [vmem:[%s207] sm:$0xf]
          %v444 = vadd.f32 %v443, %v442
          %vm445 = vcmask 519168
          %446 = vst.msk [vmem:[%s207] sm:$0xf] %vm445, %v444
        $region44: #{tpu_custom_call.1} parent=27 // pred_fallthru
          _
        %s447 = sand.u32 %s103, 1
        %s448 = scalar_lea.sflag [#allocation4], %s447
        %s449 = sand.u32 %s103, 1
        %s450 = smul.addr %s449, 4
        %s451 = scalar_lea.vmem [#allocation5], %s450
        // Predicated region
        $region45: #{tpu_custom_call.1} parent=27 // pred_check
          %p452 = pneg %p113
        $region46: #{tpu_custom_call.1} parent=27 // pred_check_branch
          %454 = sbr.rel (%p452) target = $region48
        $region47: #{tpu_custom_call.1} parent=27 // pred_region
          %s456 = ssub.s32 64, 64
          %457 = vsyncadd %s448, %s456
          %s458 = smul.addr %s23, 64
          %s459 = scalar_lea.hbm %s2, %s458
          %s461 = sshll.u32 %s451, 4
          %s462 = int_to_ptr.vmem [resolvable:$true] %s461
          %464 = dma.vmem_to_hbm [thread:$0]  %s462, 64, %s459, %s448
        $region48: #{tpu_custom_call.1} parent=27 // pred_fallthru
          _
      $region28: #{tpu_custom_call.1} parent=5 // pred_fallthru
        _
      %p465 = scmp.le.s32.totalorder 2, %s14
      // Predicated region
      $region49: #{tpu_custom_call.1} parent=5 // pred_check
        %p466 = pneg %p465
      $region50: #{tpu_custom_call.1} parent=5 // pred_check_branch
        %468 = sbr.rel (%p466) target = $region52
      $region51: #{tpu_custom_call.1} parent=5 // pred_region
        %s469 = ssub.s32 %s14, 2
        // Predicated region
        $region53: #{tpu_custom_call.1} parent=51 // pred_check
          %p470 = pneg %p119
        $region54: #{tpu_custom_call.1} parent=51 // pred_check_branch
          %472 = sbr.rel (%p470) target = $region56
        $region55: #{tpu_custom_call.1} parent=51 // pred_region
          %s473 = sand.u32 %s104, 1
          %s474 = scalar_lea.sflag [#allocation4], %s473
          %s475 = sand.u32 %s104, 1
          %s476 = smul.addr %s475, 4
          %s477 = scalar_lea.vmem [#allocation5], %s476
          %478 = dma.done %s474, 64
        $region56: #{tpu_custom_call.1} parent=51 // pred_fallthru
          _
      $region52: #{tpu_custom_call.1} parent=5 // pred_fallthru
        _
    $region6: #{tpu_custom_call.1} parent=1 // loop_footer
      %s18 = sadd.s32 1, %s14
    $region7: #{tpu_custom_call.1} parent=1 // loop_footer_branch
      %13 = sbr.rel target = $region3
    $region8: #{tpu_custom_call.1} parent=1 // loop_exit
      _
    %479 = vsyncpa [#allocation3], 1
    %s480 = scalar_lea.sflag [#allocation3], 1
    %481 = vsyncpa %s480, 1
    %482 = vsyncpa [#allocation4], 1
    %s483 = scalar_lea.sflag [#allocation4], 1
    %484 = vsyncpa %s483, 1

</llo_original>
